<compile_context>
chip_gen: v5e
topology: v5e:2x2
jax: 0.10.0
libtpu: 0.0.40
codegen_flags: <defaults>
</compile_context>

<pallas_src>
import math

import jax
import jax.numpy as jnp
from jax import lax
from jax.experimental import pallas as pl
from jax.experimental.pallas import tpu as pltpu


_LANES = 128


def _round_up(x: int, m: int) -> int:
    return (x + m - 1) // m * m


def _choose_block(bs: int, d_pad: int) -> int:
    """Largest block in {512, 256, 128} with <=10% row-padding waste and a
    modest input double-buffer footprint (keeps v5e/v7x VMEM budgets happy)."""
    for b in (512, 256, 128):
        bs_pad = _round_up(bs, b)
        waste = (bs_pad - bs) / bs_pad
        footprint = 2 * 2 * b * d_pad * 2          # lhs + tiled rhs, x2 buffers, bf16
        if waste <= 0.10 and footprint <= (24 << 20):
            return b
    return 128


def _vmem_limit(estimate_bytes: int) -> int:
    # Explicit limit: above actual usage (+headroom), below v7x's 64 MiB phys.
    return int(min(max(estimate_bytes + (8 << 20), 16 << 20), 48 << 20))


# ---------------- stage 1: normalize both halves + f32 positive --------------

def _make_normalize_kernel(sqrt_inv_tau: float, inv_tau: float):
    def kernel(x1_ref, x2_ref, n1_ref, n2_ref, pos_ref):
        x1 = x1_ref[...].astype(jnp.float32)                     # (block, d_pad)
        x2 = x2_ref[...].astype(jnp.float32)
        # 1/max(||x||, 1e-12) == rsqrt(max(||x||^2, 1e-24)); padded rows -> 0.
        inv1 = lax.rsqrt(jnp.maximum(jnp.sum(x1 * x1, axis=1, keepdims=True), 1e-24))
        inv2 = lax.rsqrt(jnp.maximum(jnp.sum(x2 * x2, axis=1, keepdims=True), 1e-24))
        n1_ref[...] = (x1 * (inv1 * sqrt_inv_tau)).astype(n1_ref.dtype)   # bf16
        n2_ref[...] = (x2 * (inv2 * sqrt_inv_tau)).astype(n2_ref.dtype)   # bf16
        # Positive term in f32: cos(f1_r, f2_r) / tau (no bf16 quantization).
        pos_ref[...] = jnp.sum(x1 * x2, axis=1, keepdims=True) * (inv1 * inv2 * inv_tau)
    return kernel


# --------------------- stage 2: tiled similarity + neg term ------------------

def _make_ntxent_kernel(inv_tau: float, block: int, n_pad_cols: int,
                        resident_rhs: bool):
    folds = block // _LANES
    # Every padded (zero) column contributes exactly exp(0 - 1/tau) to every
    # row's shifted sum; subtract the constant once at finalize instead of
    # masking columns on every step.
    pad_correction = float(n_pad_cols) * math.exp(-inv_tau)

    def _fold(x):                                 # (block, block) -> (block, 128)
        out = x[:, 0:_LANES]
        for t in range(1, folds):
            out = out + x[:, t * _LANES:(t + 1) * _LANES]
        return out

    def kernel(lhs_ref, rhs_ref, out_ref, acc_ref):
        i = pl.program_id(0)                      # row block (parallel)
        j = pl.program_id(1)                      # col block (reduction)
        nj = pl.num_programs(1)

        @pl.when(j == 0)
        def _init():
            acc_ref[...] = jnp.zeros_like(acc_ref)

        if resident_rhs:
            off = pl.multiple_of(j * block, block)
            rhs = rhs_ref[pl.ds(off, block), :]   # slice the VMEM-resident matrix
        else:
            rhs = rhs_ref[...]

        # s[r, c] = cos(f_r, f_c) / tau   (both operands carry sqrt(1/tau)).
        s = lax.dot_general(
            lhs_ref[...], rhs,
            dimension_numbers=(((1,), (1,)), ((), ())),
            preferred_element_type=jnp.float32)                  # (block, block)

        # Shifted exp: cos <= 1 so the exponent is <= ~0 (no f32 overflow).
        p = jnp.exp(s - inv_tau)

        # Hot path: plain lane-fold + accumulate (no iota / mask / extra RMW).
        @pl.when(i != j)
        def _off_diag():
            acc_ref[...] += _fold(p)

        # Cold path (one tile per row block): zero the self-similarity diagonal
        # exactly (removes exactly what the bf16 matmul added).
        @pl.when(i == j)
        def _on_diag():
            r = lax.broadcasted_iota(jnp.int32, (block, block), 0)
            c = lax.broadcasted_iota(jnp.int32, (block, block), 1)
            acc_ref[...] += _fold(jnp.where(r == c, 0.0, p))

        @pl.when(j == nj - 1)
        def _finalize():
            row_sum = jnp.sum(acc_ref[...], axis=1, keepdims=True)    # (block, 1)
            # Remove padded-column contributions; clamp keeps padded rows
            # (sliced away later) finite.
            row_sum = jnp.maximum(row_sum - pad_correction, 1e-30)
            # neg = log(sum_{c != r} exp(cos/tau))
            out_ref[...] = (jnp.log(row_sum) + inv_tau).astype(out_ref.dtype)

    return kernel


# --------------------------------- wrapper -----------------------------------

def ntxent_loss(features1: jnp.ndarray,
                features2: jnp.ndarray,
                tau: float,
                reduction: str = "mean",
                block: int | None = None) -> jnp.ndarray:
    """NTXent loss. features1/features2: [bs, feature_len]."""
    if reduction not in ("none", "mean", "sum"):
        raise ValueError(f"Reduction should be: mean, sum, none. But got - {reduction}!")
    assert features1.shape == features2.shape, (
        f"Invalid shape of input features: {features1.shape} and {features2.shape}"
    )

    bs, d = features1.shape
    inv_tau = 1.0 / float(tau)
    sqrt_inv_tau = math.sqrt(inv_tau)

    d_pad = _round_up(max(d, 1), _LANES)          # lane-align features
    if block is None:
        block = _choose_block(bs, d_pad)
    assert block % _LANES == 0, "block must be a multiple of 128"

    bs_pad = _round_up(bs, block)                 # tile-align each half
    p_rows = 2 * bs_pad
    half_blocks = bs_pad // block
    n_blocks = p_rows // block

    # Pad each half directly (no padded f32 zeros + scatter intermediate).
    f1p = jnp.pad(features1.astype(jnp.float32), ((0, bs_pad - bs), (0, d_pad - d)))
    f2p = jnp.pad(features2.astype(jnp.float32), ((0, bs_pad - bs), (0, d_pad - d)))

    # ---- stage 1: normalize rows, fold sqrt(1/tau), bf16 cast, f32 pos ------
    vmem1 = _vmem_limit(2 * 2 * block * d_pad * 4        # 2 f32 inputs, double-buffered
                        + 2 * 2 * block * d_pad * 2      # 2 bf16 outputs
                        + 2 * block * 4)                 # pos output
    n1, n2, pos = pl.pallas_call(
        _make_normalize_kernel(sqrt_inv_tau, inv_tau),
        out_shape=(jax.ShapeDtypeStruct((bs_pad, d_pad), jnp.bfloat16),
                   jax.ShapeDtypeStruct((bs_pad, d_pad), jnp.bfloat16),
                   jax.ShapeDtypeStruct((bs_pad, 1), jnp.float32)),
        grid=(half_blocks,),
        in_specs=[pl.BlockSpec((block, d_pad), lambda i: (i, 0)),
                  pl.BlockSpec((block, d_pad), lambda i: (i, 0))],
        out_specs=(pl.BlockSpec((block, d_pad), lambda i: (i, 0)),
                   pl.BlockSpec((block, d_pad), lambda i: (i, 0)),
                   pl.BlockSpec((block, 1), lambda i: (i, 0))),
        compiler_params=pltpu.CompilerParams(
            dimension_semantics=("parallel",),
            vmem_limit_bytes=vmem1),
    )(f1p, f2p)

    fm_n = jnp.concatenate([n1, n2], axis=0)      # (p_rows, d_pad) bf16

    # ---- stage 2: tiled similarity with online lane-folded row sums ---------
    # rhs residency: fetch the whole normalized matrix into VMEM once when it
    # fits a conservative cross-generation budget, else stream column tiles.
    resident_rhs = (p_rows * d_pad * 2) <= (8 << 20)
    if resident_rhs:
        rhs_spec = pl.BlockSpec((p_rows, d_pad), lambda i, j: (0, 0))
        rhs_rows = p_rows
    else:
        rhs_spec = pl.BlockSpec((block, d_pad), lambda i, j: (j, 0))
        rhs_rows = block

    vmem2 = _vmem_limit(2 * block * d_pad * 2             # lhs, double-buffered
                        + 2 * rhs_rows * d_pad * 2        # rhs
                        + block * _LANES * 4              # accumulator scratch
                        + 2 * block * 4)                  # output
    n_pad_cols = 2 * (bs_pad - bs)

    # TODO(synk): on v7x, fp8 (e4m3) operands for the similarity matmul could
    # halve operand footprint; skipped since 1/tau amplifies quantization error.
    neg_rows = pl.pallas_call(
        _make_ntxent_kernel(inv_tau, block, n_pad_cols, resident_rhs),
        out_shape=jax.ShapeDtypeStruct((p_rows, 1), jnp.float32),
        grid=(n_blocks, n_blocks),
        in_specs=[pl.BlockSpec((block, d_pad), lambda i, j: (i, 0)),   # row tile
                  rhs_spec],                                           # col source
        out_specs=pl.BlockSpec((block, 1), lambda i, j: (i, 0)),
        scratch_shapes=[pltpu.VMEM((block, _LANES), jnp.float32)],     # folded exp-sums
        compiler_params=pltpu.CompilerParams(
            dimension_semantics=("parallel", "arbitrary"),
            vmem_limit_bytes=vmem2),
    )(fm_n, fm_n)

    # ---------------- tiny O(2bs) finalization (plain-JAX glue) --------------
    neg = jnp.concatenate([neg_rows[:bs, 0], neg_rows[bs_pad:bs_pad + bs, 0]])
    pos_cat = jnp.concatenate([pos[:bs, 0], pos[:bs, 0]])
    loss = neg - pos_cat
    if reduction == "mean":
        return jnp.mean(loss)
    if reduction == "sum":
        return jnp.sum(loss)
    return loss


# ------------------------------- reference -----------------------------------

def _ntxent_reference(f1, f2, tau, reduction="mean"):
    # Pure-JAX f32 mirror of the PyTorch module.
    fm = jnp.concatenate([f1, f2], axis=0)
    fm = fm / jnp.maximum(jnp.linalg.norm(fm, axis=1, keepdims=True), 1e-12)
    cos = fm @ fm.T
    exp_cos = jnp.exp(cos / tau)
    neg = jnp.log(jnp.sum(exp_cos, axis=1) - math.e ** (1.0 / tau))
    cos12 = jnp.sum(f1 * f2, axis=1) / jnp.maximum(
        jnp.linalg.norm(f1, axis=1) * jnp.linalg.norm(f2, axis=1), 1e-8)
    pos = jnp.concatenate([cos12, cos12]) / tau
    loss = -pos + neg
    if reduction == "mean":
        return jnp.mean(loss)
    if reduction == "sum":
        return jnp.sum(loss)
    return loss


if __name__ == "__main__":
    tau = 0.1
    key = jax.random.PRNGKey(0)
    k1, k2, k3, k4 = jax.random.split(key, 4)

    # Small, unaligned case (exercises row/feature padding + pad-correction).
    bs, feat = 8, 32
    f1 = jax.random.normal(k1, (bs, feat), dtype=jnp.float32)
    f2 = jax.random.normal(k2, (bs, feat), dtype=jnp.float32)

    loss_mean = jax.block_until_ready(ntxent_loss(f1, f2, tau=tau, reduction="mean"))
    ref_mean = _ntxent_reference(f1, f2, tau, "mean")
    assert jnp.allclose(loss_mean, ref_mean, rtol=5e-2, atol=5e-2), (loss_mean, ref_mean)

    loss_none = jax.block_until_ready(ntxent_loss(f1, f2, tau=tau, reduction="none"))
    ref_none = _ntxent_reference(f1, f2, tau, "none")
    assert loss_none.shape == (2 * bs,)
    assert jnp.allclose(loss_none, ref_none, rtol=5e-2, atol=1e-1), (loss_none, ref_none)

    loss_sum = jax.block_until_ready(ntxent_loss(f1, f2, tau=tau, reduction="sum"))
    ref_sum = _ntxent_reference(f1, f2, tau, "sum")
    assert jnp.allclose(loss_sum, ref_sum, rtol=5e-2, atol=5e-2), (loss_sum, ref_sum)

    # Block-aligned case (no padding; like the catalyst docstring example).
    bs2, feat2 = 256, 64
    g1 = jax.random.normal(k3, (bs2, feat2), dtype=jnp.float32)
    g2 = jax.random.normal(k4, (bs2, feat2), dtype=jnp.float32)
    loss2 = jax.block_until_ready(ntxent_loss(g1, g2, tau=tau, reduction="mean"))
    ref2 = _ntxent_reference(g1, g2, tau, "mean")
    assert jnp.allclose(loss2, ref2, rtol=5e-2, atol=5e-2), (loss2, ref2)

    print("KERNEL_OK")
</pallas_src>

<mosaic_0001>
module attributes {stable_mosaic.version = 11 : i64} {
  func.func @kernel(%arg0: i32, %arg1: memref<128x128xf32, #tpu.memory_space<vmem>>, %arg2: memref<128x128xf32, #tpu.memory_space<vmem>>, %arg3: memref<128x128xbf16, #tpu.memory_space<vmem>>, %arg4: memref<128x128xbf16, #tpu.memory_space<vmem>>, %arg5: memref<128x1xf32, #tpu.memory_space<vmem>>) attributes {dimension_semantics = [#tpu.dimension_semantics<parallel>], iteration_bounds = array<i64: 1>, scalar_prefetch = 0 : i64, scratch_operands = 0 : i64, tpu.core_type = #tpu.core_type<tc>, window_params = [{transform_indices = @transform_0, window_bounds = array<i64: 128, 128>}, {transform_indices = @transform_1, window_bounds = array<i64: 128, 128>}, {transform_indices = @transform_2, window_bounds = array<i64: 128, 128>}, {transform_indices = @transform_3, window_bounds = array<i64: 128, 128>}, {transform_indices = @transform_4, window_bounds = array<i64: 128, 1>}]} {
    %c0 = arith.constant 0 : index
    %c0_0 = arith.constant 0 : index
    %0 = vector.load %arg1[%c0, %c0_0] : memref<128x128xf32, #tpu.memory_space<vmem>>, vector<128x128xf32>
    %c0_1 = arith.constant 0 : index
    %c0_2 = arith.constant 0 : index
    %1 = vector.load %arg2[%c0_1, %c0_2] : memref<128x128xf32, #tpu.memory_space<vmem>>, vector<128x128xf32>
    %2 = arith.mulf %0, %0 : vector<128x128xf32>
    %cst = arith.constant dense<0.000000e+00> : vector<128xf32>
    %3 = vector.multi_reduction <add>, %2, %cst [1] : vector<128x128xf32> to vector<128xf32>
    %4 = vector.shape_cast %3 : vector<128xf32> to vector<128x1xf32>
    %cst_3 = arith.constant 1.000000e-24 : f32
    %5 = vector.broadcast %cst_3 : f32 to vector<128x1xf32>
    %6 = arith.maximumf %4, %5 : vector<128x1xf32>
    %7 = math.rsqrt %6 : vector<128x1xf32>
    %8 = arith.mulf %1, %1 : vector<128x128xf32>
    %cst_4 = arith.constant dense<0.000000e+00> : vector<128xf32>
    %9 = vector.multi_reduction <add>, %8, %cst_4 [1] : vector<128x128xf32> to vector<128xf32>
    %10 = vector.shape_cast %9 : vector<128xf32> to vector<128x1xf32>
    %cst_5 = arith.constant 1.000000e-24 : f32
    %11 = vector.broadcast %cst_5 : f32 to vector<128x1xf32>
    %12 = arith.maximumf %10, %11 : vector<128x1xf32>
    %13 = math.rsqrt %12 : vector<128x1xf32>
    %cst_6 = arith.constant 3.1622777 : f32
    %14 = vector.broadcast %cst_6 : f32 to vector<128x1xf32>
    %15 = arith.mulf %7, %14 : vector<128x1xf32>
    %16 = vector.broadcast %15 : vector<128x1xf32> to vector<128x128xf32>
    %17 = arith.mulf %0, %16 : vector<128x128xf32>
    %18 = arith.truncf %17 : vector<128x128xf32> to vector<128x128xbf16>
    %c0_7 = arith.constant 0 : index
    %c0_8 = arith.constant 0 : index
    %19 = vector.load %arg3[%c0_7, %c0_8] : memref<128x128xbf16, #tpu.memory_space<vmem>>, vector<128x128xbf16>
    tpu.vector_store %arg3[%c0_7, %c0_8], %18 {strides = array<i32>} : memref<128x128xbf16, #tpu.memory_space<vmem>>, vector<128x128xbf16>,
    %cst_9 = arith.constant 3.1622777 : f32
    %20 = vector.broadcast %cst_9 : f32 to vector<128x1xf32>
    %21 = arith.mulf %13, %20 : vector<128x1xf32>
    %22 = vector.broadcast %21 : vector<128x1xf32> to vector<128x128xf32>
    %23 = arith.mulf %1, %22 : vector<128x128xf32>
    %24 = arith.truncf %23 : vector<128x128xf32> to vector<128x128xbf16>
    %c0_10 = arith.constant 0 : index
    %c0_11 = arith.constant 0 : index
    %25 = vector.load %arg4[%c0_10, %c0_11] : memref<128x128xbf16, #tpu.memory_space<vmem>>, vector<128x128xbf16>
    tpu.vector_store %arg4[%c0_10, %c0_11], %24 {strides = array<i32>} : memref<128x128xbf16, #tpu.memory_space<vmem>>, vector<128x128xbf16>,
    %26 = arith.mulf %0, %1 : vector<128x128xf32>
    %cst_12 = arith.constant dense<0.000000e+00> : vector<128xf32>
    %27 = vector.multi_reduction <add>, %26, %cst_12 [1] : vector<128x128xf32> to vector<128xf32>
    %28 = vector.shape_cast %27 : vector<128xf32> to vector<128x1xf32>
    %29 = arith.mulf %7, %13 : vector<128x1xf32>
    %cst_13 = arith.constant 1.000000e+01 : f32
    %30 = vector.broadcast %cst_13 : f32 to vector<128x1xf32>
    %31 = arith.mulf %29, %30 : vector<128x1xf32>
    %32 = arith.mulf %28, %31 : vector<128x1xf32>
    %c0_14 = arith.constant 0 : index
    %c0_15 = arith.constant 0 : index
    %33 = vector.load %arg5[%c0_14, %c0_15] : memref<128x1xf32, #tpu.memory_space<vmem>>, vector<128x1xf32>
    tpu.vector_store %arg5[%c0_14, %c0_15], %32 {strides = array<i32>} : memref<128x1xf32, #tpu.memory_space<vmem>>, vector<128x1xf32>,
    return
  }
  func.func @transform_0(%arg0: i32) -> (i32, i32) {
    %c0_i32 = arith.constant 0 : i32
    %c0_i32_0 = arith.constant 0 : i32
    return %arg0, %c0_i32 : i32, i32
  }
  func.func @transform_1(%arg0: i32) -> (i32, i32) {
    %c0_i32 = arith.constant 0 : i32
    %c0_i32_0 = arith.constant 0 : i32
    return %arg0, %c0_i32 : i32, i32
  }
  func.func @transform_2(%arg0: i32) -> (i32, i32) {
    %c0_i32 = arith.constant 0 : i32
    %c0_i32_0 = arith.constant 0 : i32
    return %arg0, %c0_i32 : i32, i32
  }
  func.func @transform_3(%arg0: i32) -> (i32, i32) {
    %c0_i32 = arith.constant 0 : i32
    %c0_i32_0 = arith.constant 0 : i32
    return %arg0, %c0_i32 : i32, i32
  }
  func.func @transform_4(%arg0: i32) -> (i32, i32) {
    %c0_i32 = arith.constant 0 : i32
    %c0_i32_0 = arith.constant 0 : i32
    return %arg0, %c0_i32 : i32, i32
  }
}

</mosaic_0001>

<llo_original>
// kernel: tpu_custom_call.1
$region0: #{tpu_custom_call.1}
  #allocation0 [shape = 'u32[]', space=smem, size = 0x4, offset = 0x4, fixed_abs, tag = 'smem constant byte address 0x4 - core index']
  #allocation1 [shape = 'u32[72,128]{1,0:T(1,128)}', space=vmem, size = 0x9000, scoped, tag = 'internal scratch']
  %s0 = inlined_call_operand.hbm [shape: f32[128,128], index: 0, kind: input, shape index: {}]
  %s1 = inlined_call_operand.hbm [shape: f32[128,128], index: 1, kind: input, shape index: {}]
  %s2 = inlined_call_operand.hbm [shape: bf16[128,128], index: 2, kind: output, shape index: {0}]
  %s3 = inlined_call_operand.hbm [shape: bf16[128,128], index: 3, kind: output, shape index: {1}]
  %s4 = inlined_call_operand.vmem [shape: f32[128,1], index: 4, kind: output, shape index: {2}]
  %5 = xla_tuple %s2, %s3, %s4
  %s6 = sld [smem:[#allocation0]]
  $region42: #{tpu_custom_call.1} parent=0
    _
  %s8 = ssub.s32 1, %s6
  %s9 = scalar_select 0, %s8, %s6
  $region1: #{tpu_custom_call.1} parent=0
    #allocation2 [shape = 'u8[65536]{0}', space=vmem, size = 0x10000, scoped, tag = 'input window, operand 0, single buffered']
    #allocation3 [shape = 's32[1]{0}', space=sflag, size = 0x4, scoped, tag = 'scoped memory for tpu_custom_call.1']
    #allocation4 [shape = 's32[1]{0}', space=sflag, size = 0x4, scoped, tag = 'scoped memory for tpu_custom_call.1']
    #allocation5 [shape = 'u8[65536]{0}', space=vmem, size = 0x10000, scoped, tag = 'input window, operand 1, single buffered']
    #allocation6 [shape = 's32[1]{0}', space=sflag, size = 0x4, scoped, tag = 'scoped memory for tpu_custom_call.1']
    #allocation7 [shape = 'u8[32768]{0}', space=vmem, size = 0x8000, scoped, tag = 'output window, operand 0, single buffered']
    #allocation8 [shape = 'u8[32768]{0}', space=vmem, size = 0x8000, scoped, tag = 'output window, operand 1, single buffered']
    #allocation9 [shape = 's32[1]{0}', space=sflag, size = 0x4, scoped, tag = 'scoped memory for tpu_custom_call.1']
    %10 = vsyncpa [#allocation3], 0
    %11 = vsyncpa [#allocation6], 0
    %12 = vsyncpa [#allocation4], 0
    %13 = vsyncpa [#allocation9], 0
    // Predicated region
    $region2: #{tpu_custom_call.1} parent=1 // pred_check
      _
    $region3: #{tpu_custom_call.1} parent=1 // pred_check_branch
      %15 = sbr.rel (0) target = $region5
    $region4: #{tpu_custom_call.1} parent=1 // pred_region
      %17 = vsyncadd [#allocation3], 0
      %s18 = sshll.u32 %s0, 4
      %s19 = int_to_ptr.hbm [resolvable:$true] %s18
      %s20 = sshll.u32 [#allocation2], 4
      %s21 = int_to_ptr.vmem [resolvable:$true] %s20
      %26 = dma.hbm_to_vmem [thread:$0]  %s19, 2048, %s21, [#allocation3], 128, 128, 8
    $region5: #{tpu_custom_call.1} parent=1 // pred_fallthru
      _
    // Predicated region
    $region6: #{tpu_custom_call.1} parent=1 // pred_check
      _
    $region7: #{tpu_custom_call.1} parent=1 // pred_check_branch
      %28 = sbr.rel (0) target = $region9
    $region8: #{tpu_custom_call.1} parent=1 // pred_region
      %30 = vsyncadd [#allocation6], 0
      %s31 = sshll.u32 %s1, 4
      %s32 = int_to_ptr.hbm [resolvable:$true] %s31
      %s33 = sshll.u32 [#allocation5], 4
      %s34 = int_to_ptr.vmem [resolvable:$true] %s33
      %39 = dma.hbm_to_vmem [thread:$0]  %s32, 2048, %s34, [#allocation6], 128, 128, 8
    $region9: #{tpu_custom_call.1} parent=1 // pred_fallthru
      _
    // Predicated region
    $region10: #{tpu_custom_call.1} parent=1 // pred_check
      _
    $region11: #{tpu_custom_call.1} parent=1 // pred_check_branch
      %41 = sbr.rel (0) target = $region13
    $region12: #{tpu_custom_call.1} parent=1 // pred_region
      %43 = dma.done [#allocation3], 2048
    $region13: #{tpu_custom_call.1} parent=1 // pred_fallthru
      _
    // Predicated region
    $region14: #{tpu_custom_call.1} parent=1 // pred_check
      _
    $region15: #{tpu_custom_call.1} parent=1 // pred_check_branch
      %45 = sbr.rel (0) target = $region17
    $region16: #{tpu_custom_call.1} parent=1 // pred_region
      %47 = dma.done [#allocation6], 2048
    $region17: #{tpu_custom_call.1} parent=1 // pred_fallthru
      _
    %v48 = vld [vmem:[#allocation2] sm:$0xff]
    %v49 = vld [vmem:[#allocation2 + $0x8] sm:$0xff]
    %v50 = vld [vmem:[#allocation2 + $0x10] sm:$0xff]
    %v51 = vld [vmem:[#allocation2 + $0x18] sm:$0xff]
    %v52 = vld [vmem:[#allocation2 + $0x20] sm:$0xff]
    %v53 = vld [vmem:[#allocation2 + $0x28] sm:$0xff]
    %v54 = vld [vmem:[#allocation2 + $0x30] sm:$0xff]
    %v55 = vld [vmem:[#allocation2 + $0x38] sm:$0xff]
    %v56 = vld [vmem:[#allocation2 + $0x40] sm:$0xff]
    %v57 = vld [vmem:[#allocation2 + $0x48] sm:$0xff]
    %v58 = vld [vmem:[#allocation2 + $0x50] sm:$0xff]
    %v59 = vld [vmem:[#allocation2 + $0x58] sm:$0xff]
    %v60 = vld [vmem:[#allocation2 + $0x60] sm:$0xff]
    %v61 = vld [vmem:[#allocation2 + $0x68] sm:$0xff]
    %v62 = vld [vmem:[#allocation2 + $0x70] sm:$0xff]
    %v63 = vld [vmem:[#allocation2 + $0x78] sm:$0xff]
    %v64 = vld [vmem:[#allocation5] sm:$0xff]
    %v65 = vld [vmem:[#allocation5 + $0x8] sm:$0xff]
    %v66 = vld [vmem:[#allocation5 + $0x10] sm:$0xff]
    %v67 = vld [vmem:[#allocation5 + $0x18] sm:$0xff]
    %v68 = vld [vmem:[#allocation5 + $0x20] sm:$0xff]
    %v69 = vld [vmem:[#allocation5 + $0x28] sm:$0xff]
    %v70 = vld [vmem:[#allocation5 + $0x30] sm:$0xff]
    %v71 = vld [vmem:[#allocation5 + $0x38] sm:$0xff]
    %v72 = vld [vmem:[#allocation5 + $0x40] sm:$0xff]
    %v73 = vld [vmem:[#allocation5 + $0x48] sm:$0xff]
    %v74 = vld [vmem:[#allocation5 + $0x50] sm:$0xff]
    %v75 = vld [vmem:[#allocation5 + $0x58] sm:$0xff]
    %v76 = vld [vmem:[#allocation5 + $0x60] sm:$0xff]
    %v77 = vld [vmem:[#allocation5 + $0x68] sm:$0xff]
    %v78 = vld [vmem:[#allocation5 + $0x70] sm:$0xff]
    %v79 = vld [vmem:[#allocation5 + $0x78] sm:$0xff]
    %v80 = vmul.f32 %v48, %v48
    %v81 = vmul.f32 %v49, %v49
    %v82 = vmul.f32 %v50, %v50
    %v83 = vmul.f32 %v51, %v51
    %v84 = vmul.f32 %v52, %v52
    %v85 = vmul.f32 %v53, %v53
    %v86 = vmul.f32 %v54, %v54
    %v87 = vmul.f32 %v55, %v55
    %v88 = vmul.f32 %v56, %v56
    %v89 = vmul.f32 %v57, %v57
    %v90 = vmul.f32 %v58, %v58
    %v91 = vmul.f32 %v59, %v59
    %v92 = vmul.f32 %v60, %v60
    %v93 = vmul.f32 %v61, %v61
    %v94 = vmul.f32 %v62, %v62
    %v95 = vmul.f32 %v63, %v63
    %96 = vadd.xlane.f32.xlu0 %v80
    %v97 = vpop.xlane.xlu0 %96
    %98 = vadd.xlane.f32.xlu0 %v81
    %v99 = vpop.xlane.xlu0 %98
    %100 = vadd.xlane.f32.xlu0 %v82
    %v101 = vpop.xlane.xlu0 %100
    %102 = vadd.xlane.f32.xlu0 %v83
    %v103 = vpop.xlane.xlu0 %102
    %104 = vadd.xlane.f32.xlu0 %v84
    %v105 = vpop.xlane.xlu0 %104
    %106 = vadd.xlane.f32.xlu0 %v85
    %v107 = vpop.xlane.xlu0 %106
    %108 = vadd.xlane.f32.xlu0 %v86
    %v109 = vpop.xlane.xlu0 %108
    %110 = vadd.xlane.f32.xlu0 %v87
    %v111 = vpop.xlane.xlu0 %110
    %112 = vadd.xlane.f32.xlu0 %v88
    %v113 = vpop.xlane.xlu0 %112
    %114 = vadd.xlane.f32.xlu0 %v89
    %v115 = vpop.xlane.xlu0 %114
    %116 = vadd.xlane.f32.xlu0 %v90
    %v117 = vpop.xlane.xlu0 %116
    %118 = vadd.xlane.f32.xlu0 %v91
    %v119 = vpop.xlane.xlu0 %118
    %120 = vadd.xlane.f32.xlu0 %v92
    %v121 = vpop.xlane.xlu0 %120
    %122 = vadd.xlane.f32.xlu0 %v93
    %v123 = vpop.xlane.xlu0 %122
    %124 = vadd.xlane.f32.xlu0 %v94
    %v125 = vpop.xlane.xlu0 %124
    %126 = vadd.xlane.f32.xlu0 %v95
    %v127 = vpop.xlane.xlu0 %126
    %v128 = vmax.f32 %v97, 1e-24
    %v129 = vmax.f32 %v99, 1e-24
    %v130 = vmax.f32 %v101, 1e-24
    %v131 = vmax.f32 %v103, 1e-24
    %v132 = vmax.f32 %v105, 1e-24
    %v133 = vmax.f32 %v107, 1e-24
    %v134 = vmax.f32 %v109, 1e-24
    %v135 = vmax.f32 %v111, 1e-24
    %v136 = vmax.f32 %v113, 1e-24
    %v137 = vmax.f32 %v115, 1e-24
    %v138 = vmax.f32 %v117, 1e-24
    %v139 = vmax.f32 %v119, 1e-24
    %v140 = vmax.f32 %v121, 1e-24
    %v141 = vmax.f32 %v123, 1e-24
    %v142 = vmax.f32 %v125, 1e-24
    %v143 = vmax.f32 %v127, 1e-24
    %v144 = vrsqrt.pop %v128
    %v145 = vmul.f32 %v144, %v128
    %v146 = vmul.f32 %v145, %v144
    %v147 = vmul.f32 0.5, %v146
    %v148 = vsub.f32 1.5, %v147
    %v149 = vmul.f32 %v144, %v148
    %vm150 = vweird.f32 %v128
    %vm151 = vweird.f32 %v144
    %vm152 = vmor %vm150, %vm151
    %v153 = vsel %vm152, %v144, %v149
    %v154 = vrsqrt.pop %v129
    %v155 = vmul.f32 %v154, %v129
    %v156 = vmul.f32 %v155, %v154
    %v157 = vmul.f32 0.5, %v156
    %v158 = vsub.f32 1.5, %v157
    %v159 = vmul.f32 %v154, %v158
    %vm160 = vweird.f32 %v129
    %vm161 = vweird.f32 %v154
    %vm162 = vmor %vm160, %vm161
    %v163 = vsel %vm162, %v154, %v159
    %v164 = vrsqrt.pop %v130
    %v165 = vmul.f32 %v164, %v130
    %v166 = vmul.f32 %v165, %v164
    %v167 = vmul.f32 0.5, %v166
    %v168 = vsub.f32 1.5, %v167
    %v169 = vmul.f32 %v164, %v168
    %vm170 = vweird.f32 %v130
    %vm171 = vweird.f32 %v164
    %vm172 = vmor %vm170, %vm171
    %v173 = vsel %vm172, %v164, %v169
    %v174 = vrsqrt.pop %v131
    %v175 = vmul.f32 %v174, %v131
    %v176 = vmul.f32 %v175, %v174
    %v177 = vmul.f32 0.5, %v176
    %v178 = vsub.f32 1.5, %v177
    %v179 = vmul.f32 %v174, %v178
    %vm180 = vweird.f32 %v131
    %vm181 = vweird.f32 %v174
    %vm182 = vmor %vm180, %vm181
    %v183 = vsel %vm182, %v174, %v179
    %v184 = vrsqrt.pop %v132
    %v185 = vmul.f32 %v184, %v132
    %v186 = vmul.f32 %v185, %v184
    %v187 = vmul.f32 0.5, %v186
    %v188 = vsub.f32 1.5, %v187
    %v189 = vmul.f32 %v184, %v188
    %vm190 = vweird.f32 %v132
    %vm191 = vweird.f32 %v184
    %vm192 = vmor %vm190, %vm191
    %v193 = vsel %vm192, %v184, %v189
    %v194 = vrsqrt.pop %v133
    %v195 = vmul.f32 %v194, %v133
    %v196 = vmul.f32 %v195, %v194
    %v197 = vmul.f32 0.5, %v196
    %v198 = vsub.f32 1.5, %v197
    %v199 = vmul.f32 %v194, %v198
    %vm200 = vweird.f32 %v133
    %vm201 = vweird.f32 %v194
    %vm202 = vmor %vm200, %vm201
    %v203 = vsel %vm202, %v194, %v199
    %v204 = vrsqrt.pop %v134
    %v205 = vmul.f32 %v204, %v134
    %v206 = vmul.f32 %v205, %v204
    %v207 = vmul.f32 0.5, %v206
    %v208 = vsub.f32 1.5, %v207
    %v209 = vmul.f32 %v204, %v208
    %vm210 = vweird.f32 %v134
    %vm211 = vweird.f32 %v204
    %vm212 = vmor %vm210, %vm211
    %v213 = vsel %vm212, %v204, %v209
    %v214 = vrsqrt.pop %v135
    %v215 = vmul.f32 %v214, %v135
    %v216 = vmul.f32 %v215, %v214
    %v217 = vmul.f32 0.5, %v216
    %v218 = vsub.f32 1.5, %v217
    %v219 = vmul.f32 %v214, %v218
    %vm220 = vweird.f32 %v135
    %vm221 = vweird.f32 %v214
    %vm222 = vmor %vm220, %vm221
    %v223 = vsel %vm222, %v214, %v219
    %v224 = vrsqrt.pop %v136
    %v225 = vmul.f32 %v224, %v136
    %v226 = vmul.f32 %v225, %v224
    %v227 = vmul.f32 0.5, %v226
    %v228 = vsub.f32 1.5, %v227
    %v229 = vmul.f32 %v224, %v228
    %vm230 = vweird.f32 %v136
    %vm231 = vweird.f32 %v224
    %vm232 = vmor %vm230, %vm231
    %v233 = vsel %vm232, %v224, %v229
    %v234 = vrsqrt.pop %v137
    %v235 = vmul.f32 %v234, %v137
    %v236 = vmul.f32 %v235, %v234
    %v237 = vmul.f32 0.5, %v236
    %v238 = vsub.f32 1.5, %v237
    %v239 = vmul.f32 %v234, %v238
    %vm240 = vweird.f32 %v137
    %vm241 = vweird.f32 %v234
    %vm242 = vmor %vm240, %vm241
    %v243 = vsel %vm242, %v234, %v239
    %v244 = vrsqrt.pop %v138
    %v245 = vmul.f32 %v244, %v138
    %v246 = vmul.f32 %v245, %v244
    %v247 = vmul.f32 0.5, %v246
    %v248 = vsub.f32 1.5, %v247
    %v249 = vmul.f32 %v244, %v248
    %vm250 = vweird.f32 %v138
    %vm251 = vweird.f32 %v244
    %vm252 = vmor %vm250, %vm251
    %v253 = vsel %vm252, %v244, %v249
    %v254 = vrsqrt.pop %v139
    %v255 = vmul.f32 %v254, %v139
    %v256 = vmul.f32 %v255, %v254
    %v257 = vmul.f32 0.5, %v256
    %v258 = vsub.f32 1.5, %v257
    %v259 = vmul.f32 %v254, %v258
    %vm260 = vweird.f32 %v139
    %vm261 = vweird.f32 %v254
    %vm262 = vmor %vm260, %vm261
    %v263 = vsel %vm262, %v254, %v259
    %v264 = vrsqrt.pop %v140
    %v265 = vmul.f32 %v264, %v140
    %v266 = vmul.f32 %v265, %v264
    %v267 = vmul.f32 0.5, %v266
    %v268 = vsub.f32 1.5, %v267
    %v269 = vmul.f32 %v264, %v268
    %vm270 = vweird.f32 %v140
    %vm271 = vweird.f32 %v264
    %vm272 = vmor %vm270, %vm271
    %v273 = vsel %vm272, %v264, %v269
    %v274 = vrsqrt.pop %v141
    %v275 = vmul.f32 %v274, %v141
    %v276 = vmul.f32 %v275, %v274
    %v277 = vmul.f32 0.5, %v276
    %v278 = vsub.f32 1.5, %v277
    %v279 = vmul.f32 %v274, %v278
    %vm280 = vweird.f32 %v141
    %vm281 = vweird.f32 %v274
    %vm282 = vmor %vm280, %vm281
    %v283 = vsel %vm282, %v274, %v279
    %v284 = vrsqrt.pop %v142
    %v285 = vmul.f32 %v284, %v142
    %v286 = vmul.f32 %v285, %v284
    %v287 = vmul.f32 0.5, %v286
    %v288 = vsub.f32 1.5, %v287
    %v289 = vmul.f32 %v284, %v288
    %vm290 = vweird.f32 %v142
    %vm291 = vweird.f32 %v284
    %vm292 = vmor %vm290, %vm291
    %v293 = vsel %vm292, %v284, %v289
    %v294 = vrsqrt.pop %v143
    %v295 = vmul.f32 %v294, %v143
    %v296 = vmul.f32 %v295, %v294
    %v297 = vmul.f32 0.5, %v296
    %v298 = vsub.f32 1.5, %v297
    %v299 = vmul.f32 %v294, %v298
    %vm300 = vweird.f32 %v143
    %vm301 = vweird.f32 %v294
    %vm302 = vmor %vm300, %vm301
    %v303 = vsel %vm302, %v294, %v299
    %v304 = vmul.f32 %v64, %v64
    %v305 = vmul.f32 %v65, %v65
    %v306 = vmul.f32 %v66, %v66
    %v307 = vmul.f32 %v67, %v67
    %v308 = vmul.f32 %v68, %v68
    %v309 = vmul.f32 %v69, %v69
    %v310 = vmul.f32 %v70, %v70
    %v311 = vmul.f32 %v71, %v71
    %v312 = vmul.f32 %v72, %v72
    %v313 = vmul.f32 %v73, %v73
    %v314 = vmul.f32 %v74, %v74
    %v315 = vmul.f32 %v75, %v75
    %v316 = vmul.f32 %v76, %v76
    %v317 = vmul.f32 %v77, %v77
    %v318 = vmul.f32 %v78, %v78
    %v319 = vmul.f32 %v79, %v79
    %320 = vadd.xlane.f32.xlu0 %v304
    %v321 = vpop.xlane.xlu0 %320
    %322 = vadd.xlane.f32.xlu0 %v305
    %v323 = vpop.xlane.xlu0 %322
    %324 = vadd.xlane.f32.xlu0 %v306
    %v325 = vpop.xlane.xlu0 %324
    %326 = vadd.xlane.f32.xlu0 %v307
    %v327 = vpop.xlane.xlu0 %326
    %328 = vadd.xlane.f32.xlu0 %v308
    %v329 = vpop.xlane.xlu0 %328
    %330 = vadd.xlane.f32.xlu0 %v309
    %v331 = vpop.xlane.xlu0 %330
    %332 = vadd.xlane.f32.xlu0 %v310
    %v333 = vpop.xlane.xlu0 %332
    %334 = vadd.xlane.f32.xlu0 %v311
    %v335 = vpop.xlane.xlu0 %334
    %336 = vadd.xlane.f32.xlu0 %v312
    %v337 = vpop.xlane.xlu0 %336
    %338 = vadd.xlane.f32.xlu0 %v313
    %v339 = vpop.xlane.xlu0 %338
    %340 = vadd.xlane.f32.xlu0 %v314
    %v341 = vpop.xlane.xlu0 %340
    %342 = vadd.xlane.f32.xlu0 %v315
    %v343 = vpop.xlane.xlu0 %342
    %344 = vadd.xlane.f32.xlu0 %v316
    %v345 = vpop.xlane.xlu0 %344
    %346 = vadd.xlane.f32.xlu0 %v317
    %v347 = vpop.xlane.xlu0 %346
    %348 = vadd.xlane.f32.xlu0 %v318
    %v349 = vpop.xlane.xlu0 %348
    %350 = vadd.xlane.f32.xlu0 %v319
    %v351 = vpop.xlane.xlu0 %350
    %v352 = vmax.f32 %v321, 1e-24
    %v353 = vmax.f32 %v323, 1e-24
    %v354 = vmax.f32 %v325, 1e-24
    %v355 = vmax.f32 %v327, 1e-24
    %v356 = vmax.f32 %v329, 1e-24
    %v357 = vmax.f32 %v331, 1e-24
    %v358 = vmax.f32 %v333, 1e-24
    %v359 = vmax.f32 %v335, 1e-24
    %v360 = vmax.f32 %v337, 1e-24
    %v361 = vmax.f32 %v339, 1e-24
    %v362 = vmax.f32 %v341, 1e-24
    %v363 = vmax.f32 %v343, 1e-24
    %v364 = vmax.f32 %v345, 1e-24
    %v365 = vmax.f32 %v347, 1e-24
    %v366 = vmax.f32 %v349, 1e-24
    %v367 = vmax.f32 %v351, 1e-24
    %v368 = vrsqrt.pop %v352
    %v369 = vmul.f32 %v368, %v352
    %v370 = vmul.f32 %v369, %v368
    %v371 = vmul.f32 0.5, %v370
    %v372 = vsub.f32 1.5, %v371
    %v373 = vmul.f32 %v368, %v372
    %vm374 = vweird.f32 %v352
    %vm375 = vweird.f32 %v368
    %vm376 = vmor %vm374, %vm375
    %v377 = vsel %vm376, %v368, %v373
    %v378 = vrsqrt.pop %v353
    %v379 = vmul.f32 %v378, %v353
    %v380 = vmul.f32 %v379, %v378
    %v381 = vmul.f32 0.5, %v380
    %v382 = vsub.f32 1.5, %v381
    %v383 = vmul.f32 %v378, %v382
    %vm384 = vweird.f32 %v353
    %vm385 = vweird.f32 %v378
    %vm386 = vmor %vm384, %vm385
    %v387 = vsel %vm386, %v378, %v383
    %v388 = vrsqrt.pop %v354
    %v389 = vmul.f32 %v388, %v354
    %v390 = vmul.f32 %v389, %v388
    %v391 = vmul.f32 0.5, %v390
    %v392 = vsub.f32 1.5, %v391
    %v393 = vmul.f32 %v388, %v392
    %vm394 = vweird.f32 %v354
    %vm395 = vweird.f32 %v388
    %vm396 = vmor %vm394, %vm395
    %v397 = vsel %vm396, %v388, %v393
    %v398 = vrsqrt.pop %v355
    %v399 = vmul.f32 %v398, %v355
    %v400 = vmul.f32 %v399, %v398
    %v401 = vmul.f32 0.5, %v400
    %v402 = vsub.f32 1.5, %v401
    %v403 = vmul.f32 %v398, %v402
    %vm404 = vweird.f32 %v355
    %vm405 = vweird.f32 %v398
    %vm406 = vmor %vm404, %vm405
    %v407 = vsel %vm406, %v398, %v403
    %v408 = vrsqrt.pop %v356
    %v409 = vmul.f32 %v408, %v356
    %v410 = vmul.f32 %v409, %v408
    %v411 = vmul.f32 0.5, %v410
    %v412 = vsub.f32 1.5, %v411
    %v413 = vmul.f32 %v408, %v412
    %vm414 = vweird.f32 %v356
    %vm415 = vweird.f32 %v408
    %vm416 = vmor %vm414, %vm415
    %v417 = vsel %vm416, %v408, %v413
    %v418 = vrsqrt.pop %v357
    %v419 = vmul.f32 %v418, %v357
    %v420 = vmul.f32 %v419, %v418
    %v421 = vmul.f32 0.5, %v420
    %v422 = vsub.f32 1.5, %v421
    %v423 = vmul.f32 %v418, %v422
    %vm424 = vweird.f32 %v357
    %vm425 = vweird.f32 %v418
    %vm426 = vmor %vm424, %vm425
    %v427 = vsel %vm426, %v418, %v423
    %v428 = vrsqrt.pop %v358
    %v429 = vmul.f32 %v428, %v358
    %v430 = vmul.f32 %v429, %v428
    %v431 = vmul.f32 0.5, %v430
    %v432 = vsub.f32 1.5, %v431
    %v433 = vmul.f32 %v428, %v432
    %vm434 = vweird.f32 %v358
    %vm435 = vweird.f32 %v428
    %vm436 = vmor %vm434, %vm435
    %v437 = vsel %vm436, %v428, %v433
    %v438 = vrsqrt.pop %v359
    %v439 = vmul.f32 %v438, %v359
    %v440 = vmul.f32 %v439, %v438
    %v441 = vmul.f32 0.5, %v440
    %v442 = vsub.f32 1.5, %v441
    %v443 = vmul.f32 %v438, %v442
    %vm444 = vweird.f32 %v359
    %vm445 = vweird.f32 %v438
    %vm446 = vmor %vm444, %vm445
    %v447 = vsel %vm446, %v438, %v443
    %v448 = vrsqrt.pop %v360
    %v449 = vmul.f32 %v448, %v360
    %v450 = vmul.f32 %v449, %v448
    %v451 = vmul.f32 0.5, %v450
    %v452 = vsub.f32 1.5, %v451
    %v453 = vmul.f32 %v448, %v452
    %vm454 = vweird.f32 %v360
    %vm455 = vweird.f32 %v448
    %vm456 = vmor %vm454, %vm455
    %v457 = vsel %vm456, %v448, %v453
    %v458 = vrsqrt.pop %v361
    %v459 = vmul.f32 %v458, %v361
    %v460 = vmul.f32 %v459, %v458
    %v461 = vmul.f32 0.5, %v460
    %v462 = vsub.f32 1.5, %v461
    %v463 = vmul.f32 %v458, %v462
    %vm464 = vweird.f32 %v361
    %vm465 = vweird.f32 %v458
    %vm466 = vmor %vm464, %vm465
    %v467 = vsel %vm466, %v458, %v463
    %v468 = vrsqrt.pop %v362
    %v469 = vmul.f32 %v468, %v362
    %v470 = vmul.f32 %v469, %v468
    %v471 = vmul.f32 0.5, %v470
    %v472 = vsub.f32 1.5, %v471
    %v473 = vmul.f32 %v468, %v472
    %vm474 = vweird.f32 %v362
    %vm475 = vweird.f32 %v468
    %vm476 = vmor %vm474, %vm475
    %v477 = vsel %vm476, %v468, %v473
    %v478 = vrsqrt.pop %v363
    %v479 = vmul.f32 %v478, %v363
    %v480 = vmul.f32 %v479, %v478
    %v481 = vmul.f32 0.5, %v480
    %v482 = vsub.f32 1.5, %v481
    %v483 = vmul.f32 %v478, %v482
    %vm484 = vweird.f32 %v363
    %vm485 = vweird.f32 %v478
    %vm486 = vmor %vm484, %vm485
    %v487 = vsel %vm486, %v478, %v483
    %v488 = vrsqrt.pop %v364
    %v489 = vmul.f32 %v488, %v364
    %v490 = vmul.f32 %v489, %v488
    %v491 = vmul.f32 0.5, %v490
    %v492 = vsub.f32 1.5, %v491
    %v493 = vmul.f32 %v488, %v492
    %vm494 = vweird.f32 %v364
    %vm495 = vweird.f32 %v488
    %vm496 = vmor %vm494, %vm495
    %v497 = vsel %vm496, %v488, %v493
    %v498 = vrsqrt.pop %v365
    %v499 = vmul.f32 %v498, %v365
    %v500 = vmul.f32 %v499, %v498
    %v501 = vmul.f32 0.5, %v500
    %v502 = vsub.f32 1.5, %v501
    %v503 = vmul.f32 %v498, %v502
    %vm504 = vweird.f32 %v365
    %vm505 = vweird.f32 %v498
    %vm506 = vmor %vm504, %vm505
    %v507 = vsel %vm506, %v498, %v503
    %v508 = vrsqrt.pop %v366
    %v509 = vmul.f32 %v508, %v366
    %v510 = vmul.f32 %v509, %v508
    %v511 = vmul.f32 0.5, %v510
    %v512 = vsub.f32 1.5, %v511
    %v513 = vmul.f32 %v508, %v512
    %vm514 = vweird.f32 %v366
    %vm515 = vweird.f32 %v508
    %vm516 = vmor %vm514, %vm515
    %v517 = vsel %vm516, %v508, %v513
    %v518 = vrsqrt.pop %v367
    %v519 = vmul.f32 %v518, %v367
    %v520 = vmul.f32 %v519, %v518
    %v521 = vmul.f32 0.5, %v520
    %v522 = vsub.f32 1.5, %v521
    %v523 = vmul.f32 %v518, %v522
    %vm524 = vweird.f32 %v367
    %vm525 = vweird.f32 %v518
    %vm526 = vmor %vm524, %vm525
    %v527 = vsel %vm526, %v518, %v523
    %v528 = vmul.f32 %v153, 3.1622777
    %v529 = vmul.f32 %v163, 3.1622777
    %v530 = vmul.f32 %v173, 3.1622777
    %v531 = vmul.f32 %v183, 3.1622777
    %v532 = vmul.f32 %v193, 3.1622777
    %v533 = vmul.f32 %v203, 3.1622777
    %v534 = vmul.f32 %v213, 3.1622777
    %v535 = vmul.f32 %v223, 3.1622777
    %v536 = vmul.f32 %v233, 3.1622777
    %v537 = vmul.f32 %v243, 3.1622777
    %v538 = vmul.f32 %v253, 3.1622777
    %v539 = vmul.f32 %v263, 3.1622777
    %v540 = vmul.f32 %v273, 3.1622777
    %v541 = vmul.f32 %v283, 3.1622777
    %v542 = vmul.f32 %v293, 3.1622777
    %v543 = vmul.f32 %v303, 3.1622777
    %v544 = vmul.f32 %v48, %v528
    %v545 = vmul.f32 %v49, %v529
    %v546 = vmul.f32 %v50, %v530
    %v547 = vmul.f32 %v51, %v531
    %v548 = vmul.f32 %v52, %v532
    %v549 = vmul.f32 %v53, %v533
    %v550 = vmul.f32 %v54, %v534
    %v551 = vmul.f32 %v55, %v535
    %v552 = vmul.f32 %v56, %v536
    %v553 = vmul.f32 %v57, %v537
    %v554 = vmul.f32 %v58, %v538
    %v555 = vmul.f32 %v59, %v539
    %v556 = vmul.f32 %v60, %v540
    %v557 = vmul.f32 %v61, %v541
    %v558 = vmul.f32 %v62, %v542
    %v559 = vmul.f32 %v63, %v543
    %v560 = vpack.c.bf16 %v544, %v544
    %v561 = vpack.c.bf16 %v545, %v545
    %v562 = vpack.c.bf16 %v546, %v546
    %v563 = vpack.c.bf16 %v547, %v547
    %v564 = vpack.c.bf16 %v548, %v548
    %v565 = vpack.c.bf16 %v549, %v549
    %v566 = vpack.c.bf16 %v550, %v550
    %v567 = vpack.c.bf16 %v551, %v551
    %v568 = vpack.c.bf16 %v552, %v552
    %v569 = vpack.c.bf16 %v553, %v553
    %v570 = vpack.c.bf16 %v554, %v554
    %v571 = vpack.c.bf16 %v555, %v555
    %v572 = vpack.c.bf16 %v556, %v556
    %v573 = vpack.c.bf16 %v557, %v557
    %v574 = vpack.c.bf16 %v558, %v558
    %v575 = vpack.c.bf16 %v559, %v559
    %576 = vst [vmem:[#allocation7] sm:$0xf] %v560
    %577 = vst [vmem:[#allocation7 + $0x4] sm:$0xf] %v561
    %578 = vst [vmem:[#allocation7 + $0x8] sm:$0xf] %v562
    %579 = vst [vmem:[#allocation7 + $0xc] sm:$0xf] %v563
    %580 = vst [vmem:[#allocation7 + $0x10] sm:$0xf] %v564
    %581 = vst [vmem:[#allocation7 + $0x14] sm:$0xf] %v565
    %582 = vst [vmem:[#allocation7 + $0x18] sm:$0xf] %v566
    %583 = vst [vmem:[#allocation7 + $0x1c] sm:$0xf] %v567
    %584 = vst [vmem:[#allocation7 + $0x20] sm:$0xf] %v568
    %585 = vst [vmem:[#allocation7 + $0x24] sm:$0xf] %v569
    %586 = vst [vmem:[#allocation7 + $0x28] sm:$0xf] %v570
    %587 = vst [vmem:[#allocation7 + $0x2c] sm:$0xf] %v571
    %588 = vst [vmem:[#allocation7 + $0x30] sm:$0xf] %v572
    %589 = vst [vmem:[#allocation7 + $0x34] sm:$0xf] %v573
    %590 = vst [vmem:[#allocation7 + $0x38] sm:$0xf] %v574
    %591 = vst [vmem:[#allocation7 + $0x3c] sm:$0xf] %v575
    %v592 = vmul.f32 %v377, 3.1622777
    %v593 = vmul.f32 %v387, 3.1622777
    %v594 = vmul.f32 %v397, 3.1622777
    %v595 = vmul.f32 %v407, 3.1622777
    %v596 = vmul.f32 %v417, 3.1622777
    %v597 = vmul.f32 %v427, 3.1622777
    %v598 = vmul.f32 %v437, 3.1622777
    %v599 = vmul.f32 %v447, 3.1622777
    %v600 = vmul.f32 %v457, 3.1622777
    %v601 = vmul.f32 %v467, 3.1622777
    %v602 = vmul.f32 %v477, 3.1622777
    %v603 = vmul.f32 %v487, 3.1622777
    %v604 = vmul.f32 %v497, 3.1622777
    %v605 = vmul.f32 %v507, 3.1622777
    %v606 = vmul.f32 %v517, 3.1622777
    %v607 = vmul.f32 %v527, 3.1622777
    %v608 = vmul.f32 %v64, %v592
    %v609 = vmul.f32 %v65, %v593
    %v610 = vmul.f32 %v66, %v594
    %v611 = vmul.f32 %v67, %v595
    %v612 = vmul.f32 %v68, %v596
    %v613 = vmul.f32 %v69, %v597
    %v614 = vmul.f32 %v70, %v598
    %v615 = vmul.f32 %v71, %v599
    %v616 = vmul.f32 %v72, %v600
    %v617 = vmul.f32 %v73, %v601
    %v618 = vmul.f32 %v74, %v602
    %v619 = vmul.f32 %v75, %v603
    %v620 = vmul.f32 %v76, %v604
    %v621 = vmul.f32 %v77, %v605
    %v622 = vmul.f32 %v78, %v606
    %v623 = vmul.f32 %v79, %v607
    %v624 = vpack.c.bf16 %v608, %v608
    %v625 = vpack.c.bf16 %v609, %v609
    %v626 = vpack.c.bf16 %v610, %v610
    %v627 = vpack.c.bf16 %v611, %v611
    %v628 = vpack.c.bf16 %v612, %v612
    %v629 = vpack.c.bf16 %v613, %v613
    %v630 = vpack.c.bf16 %v614, %v614
    %v631 = vpack.c.bf16 %v615, %v615
    %v632 = vpack.c.bf16 %v616, %v616
    %v633 = vpack.c.bf16 %v617, %v617
    %v634 = vpack.c.bf16 %v618, %v618
    %v635 = vpack.c.bf16 %v619, %v619
    %v636 = vpack.c.bf16 %v620, %v620
    %v637 = vpack.c.bf16 %v621, %v621
    %v638 = vpack.c.bf16 %v622, %v622
    %v639 = vpack.c.bf16 %v623, %v623
    %640 = vst [vmem:[#allocation8] sm:$0xf] %v624
    %641 = vst [vmem:[#allocation8 + $0x4] sm:$0xf] %v625
    %642 = vst [vmem:[#allocation8 + $0x8] sm:$0xf] %v626
    %643 = vst [vmem:[#allocation8 + $0xc] sm:$0xf] %v627
    %644 = vst [vmem:[#allocation8 + $0x10] sm:$0xf] %v628
    %645 = vst [vmem:[#allocation8 + $0x14] sm:$0xf] %v629
    %646 = vst [vmem:[#allocation8 + $0x18] sm:$0xf] %v630
    %647 = vst [vmem:[#allocation8 + $0x1c] sm:$0xf] %v631
    %648 = vst [vmem:[#allocation8 + $0x20] sm:$0xf] %v632
    %649 = vst [vmem:[#allocation8 + $0x24] sm:$0xf] %v633
    %650 = vst [vmem:[#allocation8 + $0x28] sm:$0xf] %v634
    %651 = vst [vmem:[#allocation8 + $0x2c] sm:$0xf] %v635
    %652 = vst [vmem:[#allocation8 + $0x30] sm:$0xf] %v636
    %653 = vst [vmem:[#allocation8 + $0x34] sm:$0xf] %v637
    %654 = vst [vmem:[#allocation8 + $0x38] sm:$0xf] %v638
    %655 = vst [vmem:[#allocation8 + $0x3c] sm:$0xf] %v639
    %v656 = vmul.f32 %v48, %v64
    %v657 = vmul.f32 %v49, %v65
    %v658 = vmul.f32 %v50, %v66
    %v659 = vmul.f32 %v51, %v67
    %v660 = vmul.f32 %v52, %v68
    %v661 = vmul.f32 %v53, %v69
    %v662 = vmul.f32 %v54, %v70
    %v663 = vmul.f32 %v55, %v71
    %v664 = vmul.f32 %v56, %v72
    %v665 = vmul.f32 %v57, %v73
    %v666 = vmul.f32 %v58, %v74
    %v667 = vmul.f32 %v59, %v75
    %v668 = vmul.f32 %v60, %v76
    %v669 = vmul.f32 %v61, %v77
    %v670 = vmul.f32 %v62, %v78
    %v671 = vmul.f32 %v63, %v79
    %672 = vadd.xlane.f32.xlu0 %v656
    %v673 = vpop.xlane.xlu0 %672
    %674 = vadd.xlane.f32.xlu0 %v657
    %v675 = vpop.xlane.xlu0 %674
    %676 = vadd.xlane.f32.xlu0 %v658
    %v677 = vpop.xlane.xlu0 %676
    %678 = vadd.xlane.f32.xlu0 %v659
    %v679 = vpop.xlane.xlu0 %678
    %680 = vadd.xlane.f32.xlu0 %v660
    %v681 = vpop.xlane.xlu0 %680
    %682 = vadd.xlane.f32.xlu0 %v661
    %v683 = vpop.xlane.xlu0 %682
    %684 = vadd.xlane.f32.xlu0 %v662
    %v685 = vpop.xlane.xlu0 %684
    %686 = vadd.xlane.f32.xlu0 %v663
    %v687 = vpop.xlane.xlu0 %686
    %688 = vadd.xlane.f32.xlu0 %v664
    %v689 = vpop.xlane.xlu0 %688
    %690 = vadd.xlane.f32.xlu0 %v665
    %v691 = vpop.xlane.xlu0 %690
    %692 = vadd.xlane.f32.xlu0 %v666
    %v693 = vpop.xlane.xlu0 %692
    %694 = vadd.xlane.f32.xlu0 %v667
    %v695 = vpop.xlane.xlu0 %694
    %696 = vadd.xlane.f32.xlu0 %v668
    %v697 = vpop.xlane.xlu0 %696
    %698 = vadd.xlane.f32.xlu0 %v669
    %v699 = vpop.xlane.xlu0 %698
    %700 = vadd.xlane.f32.xlu0 %v670
    %v701 = vpop.xlane.xlu0 %700
    %702 = vadd.xlane.f32.xlu0 %v671
    %v703 = vpop.xlane.xlu0 %702
    %v704 = vmul.f32 %v153, %v377
    %v705 = vmul.f32 %v163, %v387
    %v706 = vmul.f32 %v173, %v397
    %v707 = vmul.f32 %v183, %v407
    %v708 = vmul.f32 %v193, %v417
    %v709 = vmul.f32 %v203, %v427
    %v710 = vmul.f32 %v213, %v437
    %v711 = vmul.f32 %v223, %v447
    %v712 = vmul.f32 %v233, %v457
    %v713 = vmul.f32 %v243, %v467
    %v714 = vmul.f32 %v253, %v477
    %v715 = vmul.f32 %v263, %v487
    %v716 = vmul.f32 %v273, %v497
    %v717 = vmul.f32 %v283, %v507
    %v718 = vmul.f32 %v293, %v517
    %v719 = vmul.f32 %v303, %v527
    %v720 = vmul.f32 %v704, 10.0
    %v721 = vmul.f32 %v705, 10.0
    %v722 = vmul.f32 %v706, 10.0
    %v723 = vmul.f32 %v707, 10.0
    %v724 = vmul.f32 %v708, 10.0
    %v725 = vmul.f32 %v709, 10.0
    %v726 = vmul.f32 %v710, 10.0
    %v727 = vmul.f32 %v711, 10.0
    %v728 = vmul.f32 %v712, 10.0
    %v729 = vmul.f32 %v713, 10.0
    %v730 = vmul.f32 %v714, 10.0
    %v731 = vmul.f32 %v715, 10.0
    %v732 = vmul.f32 %v716, 10.0
    %v733 = vmul.f32 %v717, 10.0
    %v734 = vmul.f32 %v718, 10.0
    %v735 = vmul.f32 %v719, 10.0
    %v736 = vmul.f32 %v673, %v720
    %v737 = vmul.f32 %v675, %v721
    %v738 = vmul.f32 %v677, %v722
    %v739 = vmul.f32 %v679, %v723
    %v740 = vmul.f32 %v681, %v724
    %v741 = vmul.f32 %v683, %v725
    %v742 = vmul.f32 %v685, %v726
    %v743 = vmul.f32 %v687, %v727
    %v744 = vmul.f32 %v689, %v728
    %v745 = vmul.f32 %v691, %v729
    %v746 = vmul.f32 %v693, %v730
    %v747 = vmul.f32 %v695, %v731
    %v748 = vmul.f32 %v697, %v732
    %v749 = vmul.f32 %v699, %v733
    %v750 = vmul.f32 %v701, %v734
    %v751 = vmul.f32 %v703, %v735
    %vm752 = vcmask 7168
    %753 = vst.msk [vmem:[%s4] sm:$0xff] %vm752, %v736
    %754 = vst.msk [vmem:[%s4 + $0x8] sm:$0xff] %vm752, %v737
    %755 = vst.msk [vmem:[%s4 + $0x10] sm:$0xff] %vm752, %v738
    %756 = vst.msk [vmem:[%s4 + $0x18] sm:$0xff] %vm752, %v739
    %757 = vst.msk [vmem:[%s4 + $0x20] sm:$0xff] %vm752, %v740
    %758 = vst.msk [vmem:[%s4 + $0x28] sm:$0xff] %vm752, %v741
    %759 = vst.msk [vmem:[%s4 + $0x30] sm:$0xff] %vm752, %v742
    %760 = vst.msk [vmem:[%s4 + $0x38] sm:$0xff] %vm752, %v743
    %761 = vst.msk [vmem:[%s4 + $0x40] sm:$0xff] %vm752, %v744
    %762 = vst.msk [vmem:[%s4 + $0x48] sm:$0xff] %vm752, %v745
    %763 = vst.msk [vmem:[%s4 + $0x50] sm:$0xff] %vm752, %v746
    %764 = vst.msk [vmem:[%s4 + $0x58] sm:$0xff] %vm752, %v747
    %765 = vst.msk [vmem:[%s4 + $0x60] sm:$0xff] %vm752, %v748
    %766 = vst.msk [vmem:[%s4 + $0x68] sm:$0xff] %vm752, %v749
    %767 = vst.msk [vmem:[%s4 + $0x70] sm:$0xff] %vm752, %v750
    %768 = vst.msk [vmem:[%s4 + $0x78] sm:$0xff] %vm752, %v751
    // Predicated region
    $region18: #{tpu_custom_call.1} parent=1 // pred_check
      _
    $region19: #{tpu_custom_call.1} parent=1 // pred_check_branch
      %770 = sbr.rel (0) target = $region21
    $region20: #{tpu_custom_call.1} parent=1 // pred_region
      %772 = vsyncadd [#allocation4], 0
      %s773 = sshll.u32 [#allocation7], 4
      %s774 = int_to_ptr.vmem [resolvable:$true] %s773
      %s775 = sshll.u32 %s2, 4
      %s776 = int_to_ptr.hbm [resolvable:$true] %s775
      %781 = dma.vmem_to_hbm [thread:$0]  %s774, 1024, %s776, [#allocation4], 64, 64, 4
    $region21: #{tpu_custom_call.1} parent=1 // pred_fallthru
      _
    // Predicated region
    $region22: #{tpu_custom_call.1} parent=1 // pred_check
      _
    $region23: #{tpu_custom_call.1} parent=1 // pred_check_branch
      %783 = sbr.rel (0) target = $region25
    $region24: #{tpu_custom_call.1} parent=1 // pred_region
      %785 = vsyncadd [#allocation9], 0
      %s786 = sshll.u32 [#allocation8], 4
      %s787 = int_to_ptr.vmem [resolvable:$true] %s786
      %s788 = sshll.u32 %s3, 4
      %s789 = int_to_ptr.hbm [resolvable:$true] %s788
      %794 = dma.vmem_to_hbm [thread:$0]  %s787, 1024, %s789, [#allocation9], 64, 64, 4
    $region25: #{tpu_custom_call.1} parent=1 // pred_fallthru
      _
    // Predicated region
    $region26: #{tpu_custom_call.1} parent=1 // pred_check
      _
    $region27: #{tpu_custom_call.1} parent=1 // pred_check_branch
      %796 = sbr.rel (0) target = $region29
    $region28: #{tpu_custom_call.1} parent=1 // pred_region
      _
    $region29: #{tpu_custom_call.1} parent=1 // pred_fallthru
      _
    // Predicated region
    $region30: #{tpu_custom_call.1} parent=1 // pred_check
      _
    $region31: #{tpu_custom_call.1} parent=1 // pred_check_branch
      %798 = sbr.rel (0) target = $region33
    $region32: #{tpu_custom_call.1} parent=1 // pred_region
      %800 = dma.done [#allocation4], 1024
    $region33: #{tpu_custom_call.1} parent=1 // pred_fallthru
      _
    // Predicated region
    $region34: #{tpu_custom_call.1} parent=1 // pred_check
      _
    $region35: #{tpu_custom_call.1} parent=1 // pred_check_branch
      %802 = sbr.rel (0) target = $region37
    $region36: #{tpu_custom_call.1} parent=1 // pred_region
      %804 = dma.done [#allocation9], 1024
    $region37: #{tpu_custom_call.1} parent=1 // pred_fallthru
      _
    // Predicated region
    $region38: #{tpu_custom_call.1} parent=1 // pred_check
      _
    $region39: #{tpu_custom_call.1} parent=1 // pred_check_branch
      %806 = sbr.rel (0) target = $region41
    $region40: #{tpu_custom_call.1} parent=1 // pred_region
      _
    $region41: #{tpu_custom_call.1} parent=1 // pred_fallthru
      _
    %807 = vsyncpa [#allocation3], 1
    %808 = vsyncpa [#allocation6], 1
    %809 = vsyncpa [#allocation4], 1
    %810 = vsyncpa [#allocation9], 1

</llo_original>
